<compile_context>
chip_gen: v7x
topology: tpu7x:2x2x1
jax: 0.10.0
libtpu: 0.0.40
codegen_flags: <defaults>
</compile_context>

<pallas_src>
import functools

import jax
import jax.numpy as jnp
from jax import lax
from jax.experimental import pallas as pl
from jax.experimental.pallas import tpu as pltpu


_EPS = 1e-12            # torch.nn.functional.normalize default eps
_EPS_SQ = _EPS * _EPS   # clamp on sum of squares == max(||x||, eps) semantics


def _round_up(x, m):
    return ((x + m - 1) // m) * m


def _l2_normalize(x):
    """x / max(||x||_2, 1e-12) over the last axis, rsqrt-based (EUP slot)."""
    x32 = x.astype(jnp.float32)
    sumsq = jnp.sum(x32 * x32, axis=-1, keepdims=True)
    inv = lax.rsqrt(jnp.maximum(sumsq, _EPS_SQ))
    return x32 * inv


# ---------------------------------------------------------------------------
# Kernel 1: small table resident in VMEM; gather B rows per step via a
# one-hot MXU matmul. Dense (B, dim) output slabs, fully pipelined.
# ---------------------------------------------------------------------------
def _vmem_onehot_gather_kernel(idx_ref, w_ref, out_ref, *, normalize):
    idx = idx_ref[...]                                    # (B, 1) int32
    max_id = w_ref.shape[0]
    iota = lax.broadcasted_iota(jnp.int32, (idx.shape[0], max_id), 1)
    onehot = (idx == iota).astype(w_ref.dtype)            # (B, max_id)
    rows = jnp.dot(onehot, w_ref[...], preferred_element_type=jnp.float32)
    if normalize:
        rows = _l2_normalize(rows)
    out_ref[...] = rows.astype(out_ref.dtype)


# ---------------------------------------------------------------------------
# Kernel 2: large table stays in HBM; per grid step, gather B rows with
# manual async row DMAs into a double-buffered VMEM slab. DMAs for block i+1
# are issued before draining block i so the DMA round-trip latency is hidden.
# ---------------------------------------------------------------------------
def _hbm_dma_gather_kernel(idx_ref, w_hbm, out_ref, scratch, sem, *,
                           block_rows, normalize):
    step = pl.program_id(0)
    nsteps = pl.num_programs(0)
    slot = step % 2

    def issue(blk_idx, slot_idx):
        base = blk_idx * block_rows
        off = slot_idx * block_rows

        @pl.loop(0, block_rows)
        def _(r):
            row = idx_ref[base + r]
            pltpu.make_async_copy(w_hbm.at[row], scratch.at[off + r],
                                  sem.at[slot_idx]).start()

    # Prime: first grid step issues its own block into slot 0.
    @pl.when(step == 0)
    def _():
        issue(0, 0)

    # Prefetch next block into the other slot before draining this one.
    @pl.when(step + 1 < nsteps)
    def _():
        issue(step + 1, 1 - slot)

    # Drain current block: each wait accounts for one row's worth of bytes.
    off = pl.multiple_of(slot * block_rows, block_rows)

    @pl.loop(0, block_rows)
    def _(r):
        pltpu.make_async_copy(w_hbm.at[0], scratch.at[off + r],
                              sem.at[slot]).wait()

    rows = scratch[pl.ds(off, block_rows), :]
    if normalize:
        rows = _l2_normalize(rows)
    out_ref[...] = rows.astype(out_ref.dtype)


# ---------------------------------------------------------------------------
# Kernel 3: streaming row-normalize over the whole table (indices=None path).
# ---------------------------------------------------------------------------
def _normalize_rows_kernel(w_ref, out_ref):
    out_ref[...] = _l2_normalize(w_ref[...]).astype(out_ref.dtype)


# ---------------------------------------------------------------------------
# pallas_call wrappers
# ---------------------------------------------------------------------------
def _gather_small_table(weight, flat_idx_padded, n_pad, block_rows, normalize):
    max_id, dim = weight.shape
    idx2d = flat_idx_padded.reshape(n_pad, 1)
    kernel = functools.partial(_vmem_onehot_gather_kernel, normalize=normalize)
    return pl.pallas_call(
        kernel,
        out_shape=jax.ShapeDtypeStruct((n_pad, dim), weight.dtype),
        grid_spec=pltpu.PrefetchScalarGridSpec(
            num_scalar_prefetch=0,
            grid=(n_pad // block_rows,),
            in_specs=[
                pl.BlockSpec((block_rows, 1), lambda i: (i, 0)),
                # whole table, constant block index -> stays resident in VMEM
                pl.BlockSpec((max_id, dim), lambda i: (0, 0)),
            ],
            out_specs=pl.BlockSpec((block_rows, dim), lambda i: (i, 0)),
        ),
        compiler_params=pltpu.CompilerParams(
            dimension_semantics=("parallel",)),
    )(idx2d, weight)


def _gather_dma(weight, flat_idx_padded, n_pad, block_rows, normalize):
    max_id, dim = weight.shape
    kernel = functools.partial(_hbm_dma_gather_kernel,
                               block_rows=block_rows, normalize=normalize)
    # TODO(synk): for extremely large index sets the scalar-prefetched index
    # array must fit SMEM; chunk the call at the wrapper level in that case.
    return pl.pallas_call(
        kernel,
        out_shape=jax.ShapeDtypeStruct((n_pad, dim), weight.dtype),
        grid_spec=pltpu.PrefetchScalarGridSpec(
            num_scalar_prefetch=1,                           # indices -> SMEM
            grid=(n_pad // block_rows,),
            in_specs=[pl.BlockSpec(memory_space=pl.ANY)],    # weight stays HBM
            out_specs=pl.BlockSpec((block_rows, dim), lambda i, idx: (i, 0)),
            scratch_shapes=[
                pltpu.VMEM((2 * block_rows, dim), weight.dtype),
                pltpu.SemaphoreType.DMA((2,)),
            ],
        ),
        # Cross-step double-buffer state -> this axis must stay sequential.
        compiler_params=pltpu.CompilerParams(
            dimension_semantics=("arbitrary",)),
    )(flat_idx_padded, weight)


def _normalize_all(weight, tile_m=512):
    max_id, dim = weight.shape
    if max_id <= tile_m:
        tile_m = max_id                       # single full-extent block
    return pl.pallas_call(
        _normalize_rows_kernel,
        out_shape=jax.ShapeDtypeStruct((max_id, dim), weight.dtype),
        grid_spec=pltpu.PrefetchScalarGridSpec(
            num_scalar_prefetch=0,
            grid=(pl.cdiv(max_id, tile_m),),
            in_specs=[pl.BlockSpec((tile_m, dim), lambda i: (i, 0))],
            out_specs=pl.BlockSpec((tile_m, dim), lambda i: (i, 0)),
        ),
        compiler_params=pltpu.CompilerParams(
            dimension_semantics=("parallel",)),
    )(weight)


def representation_forward(weight, indices=None, normalize=False, shape=None,
                           block_rows=256, force_dma=False):
    """Pallas-backed Representation.forward for a plain Embedding representation.

    weight: (max_id, dim) table; shape: per-representation shape (prod == dim).
    """
    max_id, dim = weight.shape
    if shape is None:
        shape = (dim,)

    # indices=None == torch.arange(max_id), implemented as a contiguous
    # streaming path (no gather machinery at all).
    if indices is None:
        out = _normalize_all(weight) if normalize else weight
        return out.reshape(max_id, *shape)

    prefix_shape = tuple(indices.shape)
    flat_idx = jnp.asarray(indices, dtype=jnp.int32).reshape(-1)
    n = int(flat_idx.shape[0])
    if n == 0:
        return jnp.zeros(prefix_shape + tuple(shape), dtype=weight.dtype)

    # torch.nn.Embedding raises on out-of-range indices; clamp here so the
    # data-dependent DMAs / one-hot stay in bounds.
    flat_idx = jnp.clip(flat_idx, 0, max_id - 1)

    # Batch of rows per grid step: multiple of 8 for dense sublane stores; pad
    # indices with a valid row id so there are no partial blocks anywhere.
    b = int(min(block_rows, _round_up(n, 8)))
    b = max(8, _round_up(b, 8))
    n_pad = _round_up(n, b)
    if n_pad != n:
        flat_idx = jnp.concatenate(
            [flat_idx, jnp.zeros((n_pad - n,), dtype=jnp.int32)])

    table_bytes = max_id * dim * weight.dtype.itemsize
    use_small = (max_id <= 2048) and (table_bytes <= (4 << 20)) and not force_dma
    if use_small:
        out = _gather_small_table(weight, flat_idx, n_pad, b, normalize)
    else:
        out = _gather_dma(weight, flat_idx, n_pad, b, normalize)

    if n_pad != n:
        out = out[:n]
    return out.reshape(*prefix_shape, *shape)

    # TODO(synk): dropout / regularizer.update are training-time stochastic or
    # stateful side-effects; they are identity / no-op in eval and omitted.


if __name__ == "__main__":
    key = jax.random.PRNGKey(0)
    max_id, embedding_dim = 32, 128
    k_w, k_i1, k_i2 = jax.random.split(key, 3)
    # torch.nn.Embedding default init is N(0, 1).
    weight = jax.random.normal(k_w, (max_id, embedding_dim), dtype=jnp.float32)

    def ref_lookup(idx):
        return weight[idx.reshape(-1)].reshape(*idx.shape, embedding_dim)

    def ref_normalize(x):
        nrm = jnp.sqrt(jnp.sum(x * x, axis=-1, keepdims=True))
        return x / jnp.maximum(nrm, 1e-12)

    # 1) small-table (VMEM-resident, one-hot MXU) gather, multi-dim indices
    idx_a = jax.random.randint(k_i1, (2, 8), 0, max_id, dtype=jnp.int32)
    out = jax.block_until_ready(representation_forward(weight, idx_a))
    assert out.shape == (2, 8, embedding_dim)
    assert jnp.allclose(out, ref_lookup(idx_a), atol=1e-5, rtol=1e-5)

    out = jax.block_until_ready(
        representation_forward(weight, idx_a, normalize=True))
    assert jnp.allclose(out, ref_normalize(ref_lookup(idx_a)),
                        atol=1e-5, rtol=1e-5)

    # 2) multi-block small-table path with padding (n not a multiple of batch)
    idx_b = jax.random.randint(k_i2, (3, 40), 0, max_id, dtype=jnp.int32)
    out = jax.block_until_ready(
        representation_forward(weight, idx_b, normalize=True, block_rows=32))
    assert out.shape == (3, 40, embedding_dim)
    assert jnp.allclose(out, ref_normalize(ref_lookup(idx_b)),
                        atol=1e-5, rtol=1e-5)

    # 3) large-table fallback: manual double-buffered HBM row DMAs
    #    (forced here at small shape; multi-step grid exercises the prefetch)
    out = jax.block_until_ready(
        representation_forward(weight, idx_b, block_rows=32, force_dma=True))
    assert jnp.allclose(out, ref_lookup(idx_b), atol=1e-6, rtol=1e-6)
    out = jax.block_until_ready(
        representation_forward(weight, idx_b, normalize=True, block_rows=32,
                               force_dma=True))
    assert jnp.allclose(out, ref_normalize(ref_lookup(idx_b)),
                        atol=1e-5, rtol=1e-5)
    # single-step DMA grid (n fits one block)
    out = jax.block_until_ready(
        representation_forward(weight, idx_a, block_rows=256, force_dma=True))
    assert jnp.allclose(out, ref_lookup(idx_a), atol=1e-6, rtol=1e-6)

    # 4) indices=None -> all representations
    out = jax.block_until_ready(representation_forward(weight, None))
    assert out.shape == (max_id, embedding_dim)
    assert jnp.allclose(out, weight)
    out = jax.block_until_ready(
        representation_forward(weight, None, normalize=True))
    assert jnp.allclose(out, ref_normalize(weight), atol=1e-5, rtol=1e-5)

    # 5) empty indices
    out = representation_forward(weight, jnp.zeros((0,), dtype=jnp.int32))
    assert out.shape == (0, embedding_dim)

    print("KERNEL_OK")
</pallas_src>

<mosaic_0001>
module attributes {stable_mosaic.version = 11 : i64} {
  func.func @_vmem_onehot_gather_kernel(%arg0: i32, %arg1: memref<16x1xi32, #tpu.memory_space<vmem>>, %arg2: memref<32x128xf32, #tpu.memory_space<vmem>>, %arg3: memref<16x128xf32, #tpu.memory_space<vmem>>) attributes {dimension_semantics = [#tpu.dimension_semantics<parallel>], iteration_bounds = array<i64: 1>, scalar_prefetch = 0 : i64, scratch_operands = 0 : i64, tpu.core_type = #tpu.core_type<tc>, window_params = [{transform_indices = @transform_0, window_bounds = array<i64: 16, 1>}, {pipeline_mode = #tpu.pipeline_mode<synchronous>, transform_indices = @transform_1, window_bounds = array<i64: 32, 128>}, {transform_indices = @transform_2, window_bounds = array<i64: 16, 128>}]} {
    %c0 = arith.constant 0 : index
    %c0_0 = arith.constant 0 : index
    %0 = vector.load %arg1[%c0, %c0_0] : memref<16x1xi32, #tpu.memory_space<vmem>>, vector<16x1xi32>
    %1 = tpu.iota {dimensions = array<i32: 1>} : vector<16x32xi32>
    %2 = vector.broadcast %0 : vector<16x1xi32> to vector<16x32xi32>
    %3 = arith.cmpi eq, %2, %1 : vector<16x32xi32>
    %4 = arith.extui %3 : vector<16x32xi1> to vector<16x32xi32>
    %5 = arith.sitofp %4 : vector<16x32xi32> to vector<16x32xf32>
    %c0_1 = arith.constant 0 : index
    %c0_2 = arith.constant 0 : index
    %6 = vector.load %arg2[%c0_1, %c0_2] : memref<32x128xf32, #tpu.memory_space<vmem>>, vector<32x128xf32>
    %cst = arith.constant dense<0.000000e+00> : vector<16x128xf32>
    %7 = tpu.matmul %5, %6, %cst {dimension_numbers = #tpu.dot_dimension_numbers<[1], [0], [0], [1], [0, 0, 1, 1], [], []>} : vector<16x32xf32>, vector<32x128xf32>, vector<16x128xf32> -> vector<16x128xf32>
    %c0_3 = arith.constant 0 : index
    %c0_4 = arith.constant 0 : index
    %8 = vector.load %arg3[%c0_3, %c0_4] : memref<16x128xf32, #tpu.memory_space<vmem>>, vector<16x128xf32>
    tpu.vector_store %arg3[%c0_3, %c0_4], %7 {strides = array<i32>} : memref<16x128xf32, #tpu.memory_space<vmem>>, vector<16x128xf32>,
    return
  }
  func.func @transform_0(%arg0: i32) -> (i32, i32) {
    %c0_i32 = arith.constant 0 : i32
    %c0_i32_0 = arith.constant 0 : i32
    return %arg0, %c0_i32 : i32, i32
  }
  func.func @transform_1(%arg0: i32) -> (i32, i32) {
    %c0_i32 = arith.constant 0 : i32
    %c0_i32_0 = arith.constant 0 : i32
    %c0_i32_1 = arith.constant 0 : i32
    return %c0_i32, %c0_i32_0 : i32, i32
  }
  func.func @transform_2(%arg0: i32) -> (i32, i32) {
    %c0_i32 = arith.constant 0 : i32
    %c0_i32_0 = arith.constant 0 : i32
    return %arg0, %c0_i32 : i32, i32
  }
}

</mosaic_0001>

<llo_original>
// kernel: tpu_custom_call.1
$region0: #{tpu_custom_call.1}
  #allocation0 [shape = 'u32[]', space=smem, size = 0x4, offset = 0x4, fixed_abs, tag = 'smem constant byte address 0x4 - core index']
  #allocation1 [shape = 'u32[144,128]{1,0:T(1,128)}', space=vmem, size = 0x12000, scoped, tag = 'internal scratch']
  %s0 = inlined_call_operand.vmem [shape: s32[16,1], index: 0, kind: input, shape index: {}]
  %s1 = inlined_call_operand.hbm [shape: f32[32,128], index: 1, kind: input, shape index: {}]
  %s2 = inlined_call_operand.hbm [shape: f32[16,128], index: 2, kind: output, shape index: {}]
  %s3 = sld [smem:[#allocation0]]
  $region22: #{tpu_custom_call.1} parent=0
    _
  %s5 = ssub.s32 1, %s3
  %s6 = scalar_select 0, %s5, %s3
  $region1: #{tpu_custom_call.1} parent=0
    #allocation2 [shape = 'u8[16384]{0}', space=vmem, size = 0x4000, scoped, tag = 'input window, operand 1, single buffered']
    #allocation3 [shape = 's32[1]{0}', space=sflag, size = 0x4, scoped, tag = 'scoped memory for tpu_custom_call.1']
    #allocation4 [shape = 's32[1]{0}', space=sflag, size = 0x4, scoped, tag = 'scoped memory for tpu_custom_call.1']
    #allocation5 [shape = 'u8[8192]{0}', space=vmem, size = 0x2000, scoped, tag = 'output window, operand 0, single buffered']
    %7 = vsyncpa [#allocation3], 0
    %8 = vsyncpa [#allocation4], 0
    // Predicated region
    $region2: #{tpu_custom_call.1} parent=1 // pred_check
      _
    $region3: #{tpu_custom_call.1} parent=1 // pred_check_branch
      %10 = sbr.rel (0) target = $region5
    $region4: #{tpu_custom_call.1} parent=1 // pred_region
      _
    $region5: #{tpu_custom_call.1} parent=1 // pred_fallthru
      _
    // Predicated region
    $region6: #{tpu_custom_call.1} parent=1 // pred_check
      _
    $region7: #{tpu_custom_call.1} parent=1 // pred_check_branch
      %12 = sbr.rel (0) target = $region9
    $region8: #{tpu_custom_call.1} parent=1 // pred_region
      %s14 = ssub.s32 512, 512
      %15 = vsyncadd [#allocation3], %s14
      %s16 = sshll.u32 [#allocation2], 4
      %s17 = int_to_ptr.vmem [resolvable:$true] %s16
      %22 = dma.hbm_to_vmem [thread:$0]  %s1, 512, %s17, [#allocation3], 128, 128, 8
    $region9: #{tpu_custom_call.1} parent=1 // pred_fallthru
      _
    // Predicated region
    $region10: #{tpu_custom_call.1} parent=1 // pred_check
      _
    $region11: #{tpu_custom_call.1} parent=1 // pred_check_branch
      %24 = sbr.rel (0) target = $region13
    $region12: #{tpu_custom_call.1} parent=1 // pred_region
      %25 = dma.done [#allocation3], 512
    $region13: #{tpu_custom_call.1} parent=1 // pred_fallthru
      _
    %v26 = vld [vmem:[%s0] sm:$0xff]
    %v27 = vld [vmem:[%s0 + $0x8] sm:$0xff]
    %v28 = vlaneseq
    %v29 = vand.u32 %v28, 127
    %30 = vset.pattern.permute.xlu0 0
    %31 = vperm.xlu0 %30, %v26
    %v32 = vpop.permute.xlu0 %31
    %33 = vset.pattern.permute.xlu0 0
    %34 = vperm.xlu0 %33, %v27
    %v35 = vpop.permute.xlu0 %34
    %vm36 = vcmp.eq.s32.totalorder %v32, %v29
    %vm37 = vcmp.eq.s32.totalorder %v35, %v29
    %v38 = vsel %vm36, 1, 0
    %v39 = vsel %vm37, 1, 0
    %v40 = vcvt.s32.f32 %v38
    %v41 = vcvt.s32.f32 %v39
    %v42 = vld [vmem:[#allocation2] sm:$0xff]
    %v43 = vld [vmem:[#allocation2 + $0x8] sm:$0xff]
    %v44 = vld [vmem:[#allocation2 + $0x10] sm:$0xff]
    %v45 = vld [vmem:[#allocation2 + $0x18] sm:$0xff]
    %vm46 = vcmask 261120
    %v48 = vsel %vm46, %v40, 0
    %v51 = vsel %vm46, %v41, 0
    %53 = vmatprep.subr.mxu0 0.0
    %54 = vmatpush1.msra.mxu0 %v42
    %55 = vmatprep.subr.mxu0 0.0
    %56 = vmatpush1.msra.mxu0 %v43
    %57 = vmatprep.subr.mxu0 0.0
    %58 = vmatpush1.msra.mxu0 %v44
    %59 = vmatprep.subr.mxu0 0.0
    %60 = vmatpush1.msra.mxu0 %v45
    %61 = vmatprep.subr.mxu0 0.0
    %62 = vmatpush1.msra.mxu0 0.0
    %63 = vmatprep.subr.mxu0 0.0
    %64 = vmatpush1.msra.mxu0 0.0
    %65 = vmatprep.subr.mxu0 0.0
    %66 = vmatpush1.msra.mxu0 0.0
    %67 = vmatprep.subr.mxu0 0.0
    %68 = vmatpush1.msra.mxu0 0.0
    %69 = vmatprep.subr.mxu0 0.0
    %70 = vmatpush1.msra.mxu0 0.0
    %71 = vmatprep.subr.mxu0 0.0
    %72 = vmatpush1.msra.mxu0 0.0
    %73 = vmatprep.subr.mxu0 0.0
    %74 = vmatpush1.msra.mxu0 0.0
    %75 = vmatprep.subr.mxu0 0.0
    %76 = vmatpush1.msra.mxu0 0.0
    %77 = vmatprep.subr.mxu0 0.0
    %78 = vmatpush1.msra.mxu0 0.0
    %79 = vmatprep.subr.mxu0 0.0
    %80 = vmatpush1.msra.mxu0 0.0
    %81 = vmatprep.subr.mxu0 0.0
    %82 = vmatpush1.msra.mxu0 0.0
    %83 = vmatprep.subr.mxu0 0.0
    %84 = vmatpush1.msra.mxu0 0.0
    %85 = vmatprep.subr.mxu0 0.0
    %86 = vmatpush1.msra.mxu0 0.0
    %87 = vmatprep.subr.mxu0 0.0
    %88 = vmatpush1.msra.mxu0 0.0
    %89 = vmatprep.subr.mxu0 0.0
    %90 = vmatpush1.msra.mxu0 0.0
    %91 = vmatprep.subr.mxu0 0.0
    %92 = vmatpush1.msra.mxu0 0.0
    %93 = vmatprep.subr.mxu0 0.0
    %94 = vmatpush1.msra.mxu0 0.0
    %95 = vmatprep.subr.mxu0 0.0
    %96 = vmatpush1.msra.mxu0 0.0
    %97 = vmatprep.subr.mxu0 0.0
    %98 = vmatpush1.msra.mxu0 0.0
    %99 = vmatprep.subr.mxu0 0.0
    %100 = vmatpush1.msra.mxu0 0.0
    %101 = vmatprep.subr.mxu0 0.0
    %102 = vmatpush1.msra.mxu0 0.0
    %103 = vmatprep.subr.mxu0 0.0
    %104 = vmatpush1.msra.mxu0 0.0
    %105 = vmatprep.subr.mxu0 0.0
    %106 = vmatpush1.msra.mxu0 0.0
    %107 = vmatprep.subr.mxu0 0.0
    %108 = vmatpush1.msra.mxu0 0.0
    %109 = vmatprep.subr.mxu0 0.0
    %110 = vmatpush1.msra.mxu0 0.0
    %111 = vmatprep.subr.mxu0 0.0
    %112 = vmatpush1.msra.mxu0 0.0
    %113 = vmatprep.subr.mxu0 0.0
    %114 = vmatpush1.msra.mxu0 0.0
    %115 = vmatprep.subr.mxu0 0.0
    %116 = vmatpush1.msra.mxu0 0.0
    %117 = vmatprep.mubr.f32.mxu0 0.0
    %118 = vmatmul.mubr.f32.gmra.mrb[0].mxu0 %v48
    %v119 = vpop.f32.mrb[0].mxu0
    %v120 = vadd.f32 0.0, %v119
    %v121 = vpop.f32.mrb[0].mxu0
    %122 = vmatprep.mubr.f32.mxu0 0.0
    %123 = vmatmul.mubr.f32.gmra.mrb[0].mxu0 %v51
    %v124 = vpop.f32.mrb[0].mxu0
    %v125 = vadd.f32 0.0, %v124
    %v126 = vpop.f32.mrb[0].mxu0
    %127 = vdwg.mxu0
    %128 = vst [vmem:[#allocation5] sm:$0xff] %v120
    %129 = vst [vmem:[#allocation5 + $0x8] sm:$0xff] %v125
    // Predicated region
    $region14: #{tpu_custom_call.1} parent=1 // pred_check
      _
    $region15: #{tpu_custom_call.1} parent=1 // pred_check_branch
      %131 = sbr.rel (0) target = $region17
    $region16: #{tpu_custom_call.1} parent=1 // pred_region
      %s133 = ssub.s32 256, 256
      %134 = vsyncadd [#allocation4], %s133
      %s135 = sshll.u32 [#allocation5], 4
      %s136 = int_to_ptr.vmem [resolvable:$true] %s135
      %141 = dma.vmem_to_hbm [thread:$0]  %s136, 256, %s2, [#allocation4], 128, 128, 8
    $region17: #{tpu_custom_call.1} parent=1 // pred_fallthru
      _
    // Predicated region
    $region18: #{tpu_custom_call.1} parent=1 // pred_check
      _
    $region19: #{tpu_custom_call.1} parent=1 // pred_check_branch
      %143 = sbr.rel (0) target = $region21
    $region20: #{tpu_custom_call.1} parent=1 // pred_region
      %144 = dma.done [#allocation4], 256
    $region21: #{tpu_custom_call.1} parent=1 // pred_fallthru
      _
    %145 = vsyncpa [#allocation3], 1
    %146 = vsyncpa [#allocation4], 1

</llo_original>
